<compile_context>
chip_gen: v5e
topology: v5e:2x2
jax: 0.10.0
libtpu: 0.0.40
codegen_flags: <defaults>
</compile_context>

<pallas_src>
import jax
import jax.numpy as jnp
from jax.experimental import pallas as pl
from jax.experimental.pallas import tpu as pltpu


def _round_up(x, m):
    return (x + m - 1) // m * m


def _vmem_capacity_bytes():
    try:
        cap = int(getattr(pltpu.get_tpu_info(), "vmem_capacity_bytes", 0))
        if cap > 0:
            return cap
    except Exception:
        pass
    return 64 * 1024 * 1024  # conservative fallback (v7x per-TC VMEM)


def _onehot_dict_kernel(x_ref, emb_ref, o_ref):
    # x_ref:   (TM, V)      one tile of rows, full vocab axis
    # emb_ref: (V,  E_out)  full embedding table (resident across the grid)
    # o_ref:   (TM, E_out)
    x = x_ref[...]
    tm, v = x.shape

    # First-occurrence argmax over the vocab axis, kept 2-D throughout.
    x_max = jnp.max(x, axis=-1, keepdims=True)                     # (TM, 1)
    iota = jax.lax.broadcasted_iota(jnp.int32, (tm, v), 1)         # (TM, V)
    big = jnp.iinfo(jnp.int32).max
    tokens = jnp.min(jnp.where(x == x_max, iota, big),
                     axis=-1, keepdims=True)                       # (TM, 1)

    # One-hot in the table dtype (exact for 0/1 in any dtype).
    onehot = (iota == tokens).astype(emb_ref.dtype)                # (TM, V)

    # one_hot @ E == embedding lookup on the MXU, f32 accumulation.
    o_ref[...] = jnp.dot(
        onehot, emb_ref[...], preferred_element_type=jnp.float32
    ).astype(o_ref.dtype)


def one_hot_dictionary(x, embedding, *, target_tile_bytes=2 * 1024 * 1024):
    """x: (B, N, V) float, embedding: (V, E) float -> (B, N, E)."""
    B, N, V = x.shape
    Vw, E = embedding.shape
    assert V == Vw
    M = B * N

    x2d = x.reshape(M, V)

    # Lane-dense output only when E < 128; otherwise keep the true E.
    if E < 128:
        E_out = 128
        emb = jnp.pad(embedding, ((0, 0), (0, E_out - E)))
    else:
        E_out = E
        emb = embedding

    xb = x2d.dtype.itemsize
    eb = emb.dtype.itemsize

    # Layout-padded dims for VMEM accounting ((8, 128) tiling).
    V_l = _round_up(V, 128)          # V as a lane (last) dim
    V_s = _round_up(V, 8)            # V as a sublane (second-to-last) dim
    E_l = _round_up(E_out, 128)

    vmem_cap = _vmem_capacity_bytes()
    budget = int(0.70 * vmem_cap)

    def footprint(t):
        return (2 * t * V_l * xb          # double-buffered x tile
                + V_s * E_l * eb          # single-buffered (revisited) table
                + 2 * t * E_l * eb        # double-buffered output tile
                + t * V_l * eb            # one-hot tile
                + 3 * t * V_l * 4         # iota / compare / where temporaries
                + t * E_l * 4)            # f32 matmul accumulator

    # Auto-grow tm toward ~target_tile_bytes per x buffer, MXU-friendly,
    # then cap for >= 2 grid steps (megacore) and shrink to the VMEM budget.
    tm = max(8, target_tile_bytes // max(1, V_l * xb))
    tm = (tm // 256) * 256 if tm >= 256 else _round_up(tm, 8)
    tm = min(tm, _round_up(M, 8))
    if M > 8:
        tm = min(tm, _round_up(pl.cdiv(M, 2), 8))
    tm = max(8, tm)
    while tm > 8 and footprint(tm) > budget:
        tm = max(8, _round_up(tm // 2, 8))

    grid = (pl.cdiv(M, tm),)   # no M-pad: partial last block writes are masked

    vmem_limit = int(min(int(0.85 * vmem_cap),
                         max(32 * 1024 * 1024,
                             footprint(tm) + 8 * 1024 * 1024)))

    def call(single_buffer_table):
        if single_buffer_table:
            table_spec = pl.BlockSpec((V, E_out), lambda i: (0, 0),
                                      pipeline_mode=pl.Buffered(1))
        else:
            table_spec = pl.BlockSpec((V, E_out), lambda i: (0, 0))
        return pl.pallas_call(
            _onehot_dict_kernel,
            out_shape=jax.ShapeDtypeStruct((M, E_out), emb.dtype),
            grid_spec=pltpu.PrefetchScalarGridSpec(
                num_scalar_prefetch=0,
                grid=grid,
                in_specs=[
                    # Row tile of x (streams over the grid).
                    pl.BlockSpec((tm, V), lambda i: (i, 0)),
                    # Full embedding table, constant block index.
                    table_spec,
                ],
                out_specs=pl.BlockSpec((tm, E_out), lambda i: (i, 0)),
            ),
            compiler_params=pltpu.CompilerParams(
                dimension_semantics=("parallel",),
                vmem_limit_bytes=vmem_limit,
            ),
        )(x2d, emb)

    try:
        out2d = call(True)      # single-buffered resident table
    except Exception:
        out2d = call(False)     # fall back to default pipelining

    if E_out != E:
        out2d = out2d[:, :E]
    return out2d.reshape(B, N, E)


def reference(x, embedding):
    tokens = jnp.argmax(x, axis=-1)
    return embedding[tokens]


if __name__ == "__main__":
    B, N, V, E = 2, 8, 16, 32

    key = jax.random.PRNGKey(0)
    kx, kemb = jax.random.split(key)

    x = jax.random.normal(kx, (B, N, V), dtype=jnp.float32)
    # nn.Embedding default init: N(0, 1)
    embedding = jax.random.normal(kemb, (V, E), dtype=jnp.float32)

    out = one_hot_dictionary(x, embedding)
    out = jax.block_until_ready(out)

    ref = reference(x, embedding)
    assert out.shape == (B, N, E)
    assert jnp.allclose(out, ref, atol=1e-5), "mismatch vs reference"

    print("KERNEL_OK")
</pallas_src>

<mosaic_0001>
module attributes {stable_mosaic.version = 11 : i64} {
  func.func @_onehot_dict_kernel(%arg0: i32, %arg1: memref<8x16xf32, #tpu.memory_space<vmem>>, %arg2: memref<16x128xf32, #tpu.memory_space<vmem>>, %arg3: memref<8x128xf32, #tpu.memory_space<vmem>>) attributes {dimension_semantics = [#tpu.dimension_semantics<parallel>], iteration_bounds = array<i64: 2>, scalar_prefetch = 0 : i64, scratch_operands = 0 : i64, tpu.core_type = #tpu.core_type<tc>, window_params = [{transform_indices = @transform_0, window_bounds = array<i64: 8, 16>}, {pipeline_mode = #tpu.pipeline_mode<synchronous>, transform_indices = @transform_1, window_bounds = array<i64: 16, 128>}, {transform_indices = @transform_2, window_bounds = array<i64: 8, 128>}]} {
    %c0 = arith.constant 0 : index
    %c0_0 = arith.constant 0 : index
    %0 = vector.load %arg1[%c0, %c0_0] : memref<8x16xf32, #tpu.memory_space<vmem>>, vector<8x16xf32>
    %cst = arith.constant dense<0xFF800000> : vector<8xf32>
    %1 = vector.multi_reduction <maximumf>, %0, %cst [1] : vector<8x16xf32> to vector<8xf32>
    %2 = vector.shape_cast %1 : vector<8xf32> to vector<8x1xf32>
    %3 = tpu.iota {dimensions = array<i32: 1>} : vector<8x16xi32>
    %4 = vector.broadcast %2 : vector<8x1xf32> to vector<8x16xf32>
    %5 = arith.cmpf oeq, %0, %4 : vector<8x16xf32>
    %c2147483647_i32 = arith.constant 2147483647 : i32
    %6 = vector.broadcast %c2147483647_i32 : i32 to vector<8x16xi32>
    %7 = arith.select %5, %3, %6 : vector<8x16xi1>, vector<8x16xi32>
    %cst_1 = arith.constant dense<2147483647> : vector<8xi32>
    %8 = vector.multi_reduction <minsi>, %7, %cst_1 [1] : vector<8x16xi32> to vector<8xi32>
    %9 = vector.shape_cast %8 : vector<8xi32> to vector<8x1xi32>
    %10 = vector.broadcast %9 : vector<8x1xi32> to vector<8x16xi32>
    %11 = arith.cmpi eq, %3, %10 : vector<8x16xi32>
    %12 = arith.extui %11 : vector<8x16xi1> to vector<8x16xi32>
    %13 = arith.sitofp %12 : vector<8x16xi32> to vector<8x16xf32>
    %c0_2 = arith.constant 0 : index
    %c0_3 = arith.constant 0 : index
    %14 = vector.load %arg2[%c0_2, %c0_3] : memref<16x128xf32, #tpu.memory_space<vmem>>, vector<16x128xf32>
    %cst_4 = arith.constant dense<0.000000e+00> : vector<8x128xf32>
    %15 = tpu.matmul %13, %14, %cst_4 {dimension_numbers = #tpu.dot_dimension_numbers<[1], [0], [0], [1], [0, 0, 1, 1], [], []>} : vector<8x16xf32>, vector<16x128xf32>, vector<8x128xf32> -> vector<8x128xf32>
    %c0_5 = arith.constant 0 : index
    %c0_6 = arith.constant 0 : index
    %16 = vector.load %arg3[%c0_5, %c0_6] : memref<8x128xf32, #tpu.memory_space<vmem>>, vector<8x128xf32>
    tpu.vector_store %arg3[%c0_5, %c0_6], %15 {strides = array<i32>} : memref<8x128xf32, #tpu.memory_space<vmem>>, vector<8x128xf32>,
    return
  }
  func.func @transform_0(%arg0: i32) -> (i32, i32) {
    %c0_i32 = arith.constant 0 : i32
    %c0_i32_0 = arith.constant 0 : i32
    return %arg0, %c0_i32 : i32, i32
  }
  func.func @transform_1(%arg0: i32) -> (i32, i32) {
    %c0_i32 = arith.constant 0 : i32
    %c0_i32_0 = arith.constant 0 : i32
    %c0_i32_1 = arith.constant 0 : i32
    return %c0_i32, %c0_i32_0 : i32, i32
  }
  func.func @transform_2(%arg0: i32) -> (i32, i32) {
    %c0_i32 = arith.constant 0 : i32
    %c0_i32_0 = arith.constant 0 : i32
    return %arg0, %c0_i32 : i32, i32
  }
}

module attributes {stable_mosaic.version = 11 : i64} {
  func.func @_onehot_dict_kernel(%arg0: i32, %arg1: memref<8x16xf32, #tpu.memory_space<vmem>>, %arg2: memref<16x128xf32, #tpu.memory_space<vmem>>, %arg3: memref<8x128xf32, #tpu.memory_space<vmem>>) attributes {dimension_semantics = [#tpu.dimension_semantics<parallel>], iteration_bounds = array<i64: 2>, scalar_prefetch = 0 : i64, scratch_operands = 0 : i64, tpu.core_type = #tpu.core_type<tc>, window_params = [{transform_indices = @transform_0, window_bounds = array<i64: 8, 16>}, {pipeline_mode = #tpu.pipeline_mode<synchronous>, transform_indices = @transform_1, window_bounds = array<i64: 16, 128>}, {transform_indices = @transform_2, window_bounds = array<i64: 8, 128>}]} {
    %c0 = arith.constant 0 : index
    %c0_0 = arith.constant 0 : index
    %0 = vector.load %arg1[%c0, %c0_0] : memref<8x16xf32, #tpu.memory_space<vmem>>, vector<8x16xf32>
    %cst = arith.constant dense<0xFF800000> : vector<8xf32>
    %1 = vector.multi_reduction <maximumf>, %0, %cst [1] : vector<8x16xf32> to vector<8xf32>
    %2 = vector.shape_cast %1 : vector<8xf32> to vector<8x1xf32>
    %3 = tpu.iota {dimensions = array<i32: 1>} : vector<8x16xi32>
    %4 = vector.broadcast %2 : vector<8x1xf32> to vector<8x16xf32>
    %5 = arith.cmpf oeq, %0, %4 : vector<8x16xf32>
    %c2147483647_i32 = arith.constant 2147483647 : i32
    %6 = vector.broadcast %c2147483647_i32 : i32 to vector<8x16xi32>
    %7 = arith.select %5, %3, %6 : vector<8x16xi1>, vector<8x16xi32>
    %cst_1 = arith.constant dense<2147483647> : vector<8xi32>
    %8 = vector.multi_reduction <minsi>, %7, %cst_1 [1] : vector<8x16xi32> to vector<8xi32>
    %9 = vector.shape_cast %8 : vector<8xi32> to vector<8x1xi32>
    %10 = vector.broadcast %9 : vector<8x1xi32> to vector<8x16xi32>
    %11 = arith.cmpi eq, %3, %10 : vector<8x16xi32>
    %12 = arith.extui %11 : vector<8x16xi1> to vector<8x16xi32>
    %13 = arith.sitofp %12 : vector<8x16xi32> to vector<8x16xf32>
    %c0_2 = arith.constant 0 : index
    %c0_3 = arith.constant 0 : index
    %14 = vector.load %arg2[%c0_2, %c0_3] : memref<16x128xf32, #tpu.memory_space<vmem>>, vector<16x128xf32>
    %cst_4 = arith.constant dense<0.000000e+00> : vector<8x128xf32>
    %15 = tpu.matmul %13, %14, %cst_4 {dimension_numbers = #tpu.dot_dimension_numbers<[1], [0], [0], [1], [0, 0, 1, 1], [], []>} : vector<8x16xf32>, vector<16x128xf32>, vector<8x128xf32> -> vector<8x128xf32>
    %c0_5 = arith.constant 0 : index
    %c0_6 = arith.constant 0 : index
    %16 = vector.load %arg3[%c0_5, %c0_6] : memref<8x128xf32, #tpu.memory_space<vmem>>, vector<8x128xf32>
    tpu.vector_store %arg3[%c0_5, %c0_6], %15 {strides = array<i32>} : memref<8x128xf32, #tpu.memory_space<vmem>>, vector<8x128xf32>,
    return
  }
  func.func @transform_0(%arg0: i32) -> (i32, i32) {
    %c0_i32 = arith.constant 0 : i32
    %c0_i32_0 = arith.constant 0 : i32
    return %arg0, %c0_i32 : i32, i32
  }
  func.func @transform_1(%arg0: i32) -> (i32, i32) {
    %c0_i32 = arith.constant 0 : i32
    %c0_i32_0 = arith.constant 0 : i32
    %c0_i32_1 = arith.constant 0 : i32
    return %c0_i32, %c0_i32_0 : i32, i32
  }
  func.func @transform_2(%arg0: i32) -> (i32, i32) {
    %c0_i32 = arith.constant 0 : i32
    %c0_i32_0 = arith.constant 0 : i32
    return %arg0, %c0_i32 : i32, i32
  }
}

</mosaic_0001>

<llo_original>
// kernel: tpu_custom_call.1
$region0: #{tpu_custom_call.1}
  #allocation0 [shape = 'u32[]', space=smem, size = 0x4, offset = 0x4, fixed_abs, tag = 'smem constant byte address 0x4 - core index']
  #allocation1 [shape = 'u32[72,128]{1,0:T(1,128)}', space=vmem, size = 0x9000, scoped, tag = 'internal scratch']
  %s0 = inlined_call_operand.hbm [shape: f32[16,16], index: 0, kind: input, shape index: {}]
  %s1 = inlined_call_operand.hbm [shape: f32[16,128], index: 1, kind: input, shape index: {}]
  %s2 = inlined_call_operand.hbm [shape: f32[16,128], index: 2, kind: output, shape index: {}]
  %s3 = sld [smem:[#allocation0]]
  $region49: #{tpu_custom_call.1} parent=0
    _
  %s5 = ssub.s32 1, %s3
  %s6 = scalar_select 0, %s5, %s3
  $region1: #{tpu_custom_call.1} parent=0
    #allocation2 [shape = 'u8[8192]{0}', space=vmem, size = 0x2000, scoped, tag = 'input window, operand 0']
    #allocation3 [shape = 's32[2]{0}', space=sflag, size = 0x8, scoped, tag = 'scoped memory for tpu_custom_call.1']
    #allocation4 [shape = 's32[2]{0}', space=sflag, size = 0x8, scoped, tag = 'scoped memory for tpu_custom_call.1']
    #allocation5 [shape = 'u8[8192]{0}', space=vmem, size = 0x2000, scoped, tag = 'input window, operand 1, single buffered']
    #allocation6 [shape = 's32[1]{0}', space=sflag, size = 0x4, scoped, tag = 'scoped memory for tpu_custom_call.1']
    #allocation7 [shape = 'u8[8192]{0}', space=vmem, size = 0x2000, scoped, tag = 'output window, operand 0']
    %7 = vsyncpa [#allocation3], 0
    %s8 = scalar_lea.sflag [#allocation3], 1
    %9 = vsyncpa %s8, 0
    %10 = vsyncpa [#allocation6], 0
    %11 = vsyncpa [#allocation4], 0
    %s12 = scalar_lea.sflag [#allocation4], 1
    %13 = vsyncpa %s12, 0
    loop: start=0, step=1, limit=4
    $region2: #{tpu_custom_call.1} parent=1 // loop_pre_header
      _
    $region3: #{tpu_custom_call.1} parent=1 // loop_header
      %s15 = sphi 0, %s19
      %p16 = scmp.ge.s32.totalorder %s15, 4
      %s25 = sphi 0, %s27
      %s28 = sphi 0, %s25
      %s29 = sphi 0, %s28
      %s45 = sphi 0, %s29
      %s49 = sphi 0, %s49
      %s51 = sphi 0, %s49
      %s52 = sphi 0, %s51
      %s66 = sphi 0, %s52
      %s72 = sphi 0, %s74
      %s75 = sphi 0, %s72
      %s76 = sphi 0, %s75
      %s92 = sphi 0, %s76
    $region4: #{tpu_custom_call.1} parent=1 // loop_header_branch
      %18 = sbr.rel (%p16) target = $region8
    $region5: #{tpu_custom_call.1} parent=1 // loop_body
      %s20 = ssub.s32 %s15, 1
      %s21 = ssub.s32 %s15, 2
      %s22 = sadd.s32 %s15, 1
      %s23 = ssub.s32 %s15, %s22
      %p24 = scmp.eq.s32.totalorder %s23, 0
      %s26 = sadd.s32 %s25, 1
      %s27 = scalar_select %p24, %s25, %s26
      %p30 = pneg %p24
      %p31 = scmp.eq.s32.totalorder %s15, 1
      %p32 = por %p30, %p31
      %p33 = scmp.ne.s32.totalorder %s25, %s28
      %p34 = scmp.eq.s32.totalorder %s15, 0
      %p35 = por %p33, %p34
      %p36 = scmp.ne.s32.totalorder %s25, %s28
      %p37 = scmp.eq.s32.totalorder %s20, 1
      %p38 = por %p36, %p37
      %p39 = scmp.ne.s32.totalorder %s28, %s29
      %p40 = scmp.eq.s32.totalorder %s20, 0
      %p41 = por %p39, %p40
      %p42 = scmp.ne.s32.totalorder %s28, %s29
      %p43 = scmp.eq.s32.totalorder %s21, 1
      %p44 = por %p42, %p43
      %p46 = scmp.ne.s32.totalorder %s29, %s45
      %p47 = scmp.eq.s32.totalorder %s21, 0
      %p48 = por %p46, %p47
      %s50 = sadd.s32 %s49, 1
      %p53 = scmp.eq.s32.totalorder %s15, 1
      %p54 = scmp.ne.s32.totalorder %s49, %s51
      %p55 = scmp.eq.s32.totalorder %s15, 0
      %p56 = por %p54, %p55
      %p57 = scmp.ne.s32.totalorder %s49, %s51
      %p58 = scmp.eq.s32.totalorder %s20, 1
      %p59 = por %p57, %p58
      %p60 = scmp.ne.s32.totalorder %s51, %s52
      %p61 = scmp.eq.s32.totalorder %s20, 0
      %p62 = por %p60, %p61
      %p63 = scmp.ne.s32.totalorder %s51, %s52
      %p64 = scmp.eq.s32.totalorder %s21, 1
      %p65 = por %p63, %p64
      %p67 = scmp.ne.s32.totalorder %s52, %s66
      %p68 = scmp.eq.s32.totalorder %s21, 0
      %p69 = por %p67, %p68
      %s70 = ssub.s32 %s15, %s22
      %p71 = scmp.eq.s32.totalorder %s70, 0
      %s73 = sadd.s32 %s72, 1
      %s74 = scalar_select %p71, %s72, %s73
      %p77 = pneg %p71
      %p78 = scmp.eq.s32.totalorder %s15, 1
      %p79 = por %p77, %p78
      %p80 = scmp.ne.s32.totalorder %s72, %s75
      %p81 = scmp.eq.s32.totalorder %s15, 0
      %p82 = por %p80, %p81
      %p83 = scmp.ne.s32.totalorder %s72, %s75
      %p84 = scmp.eq.s32.totalorder %s20, 1
      %p85 = por %p83, %p84
      %p86 = scmp.ne.s32.totalorder %s75, %s76
      %p87 = scmp.eq.s32.totalorder %s20, 0
      %p88 = por %p86, %p87
      %p89 = scmp.ne.s32.totalorder %s75, %s76
      %p90 = scmp.eq.s32.totalorder %s21, 1
      %p91 = por %p89, %p90
      %p93 = scmp.ne.s32.totalorder %s76, %s92
      %p94 = scmp.eq.s32.totalorder %s21, 0
      %p95 = por %p93, %p94
      %p96 = scmp.le.s32.totalorder 1, %s15
      %p97 = scmp.lt.s32.totalorder %s15, 3
      %p98 = pnand %p96, %p97
      %p99 = pneg %p98
      // Predicated region
      $region9: #{tpu_custom_call.1} parent=5 // pred_check
        _
      $region10: #{tpu_custom_call.1} parent=5 // pred_check_branch
        %101 = sbr.rel (%p98) target = $region12
      $region11: #{tpu_custom_call.1} parent=5 // pred_region
        %s102 = ssub.s32 %s15, 1
        // Predicated region
        $region13: #{tpu_custom_call.1} parent=11 // pred_check
          %p103 = pneg %p62
        $region14: #{tpu_custom_call.1} parent=11 // pred_check_branch
          %105 = sbr.rel (%p103) target = $region16
        $region15: #{tpu_custom_call.1} parent=11 // pred_region
          %107 = vsyncadd [#allocation6], 0
          %s108 = sshll.u32 %s1, 4
          %s109 = int_to_ptr.hbm [resolvable:$true] %s108
          %s110 = sshll.u32 [#allocation5], 4
          %s111 = int_to_ptr.vmem [resolvable:$true] %s110
          %116 = dma.hbm_to_vmem [thread:$0]  %s109, 256, %s111, [#allocation6], 128, 128, 8
        $region16: #{tpu_custom_call.1} parent=11 // pred_fallthru
          _
      $region12: #{tpu_custom_call.1} parent=5 // pred_fallthru
        _
      %p117 = scmp.lt.s32.totalorder %s15, 2
      // Predicated region
      $region17: #{tpu_custom_call.1} parent=5 // pred_check
        %p118 = pneg %p117
      $region18: #{tpu_custom_call.1} parent=5 // pred_check_branch
        %120 = sbr.rel (%p118) target = $region20
      $region19: #{tpu_custom_call.1} parent=5 // pred_region
        // Predicated region
        $region21: #{tpu_custom_call.1} parent=19 // pred_check
          %p121 = pneg %p35
        $region22: #{tpu_custom_call.1} parent=19 // pred_check_branch
          %123 = sbr.rel (%p121) target = $region24
        $region23: #{tpu_custom_call.1} parent=19 // pred_region
          %s124 = sand.u32 %s25, 1
          %s125 = scalar_lea.sflag [#allocation3], %s124
          %s126 = sand.u32 %s25, 1
          %s127 = smul.addr %s126, 8
          %s128 = scalar_lea.vmem [#allocation2], %s127
          %130 = vsyncadd %s125, 0
          %s131 = smul.addr %s15, 8
          %s132 = scalar_lea.hbm %s0, %s131
          %s134 = sshll.u32 %s132, 4
          %s135 = int_to_ptr.hbm [resolvable:$true] %s134
          %s136 = sshll.u32 %s128, 4
          %s137 = int_to_ptr.vmem [resolvable:$true] %s136
          %139 = dma.hbm_to_vmem [thread:$0]  %s135, 128, %s137, %s125
        $region24: #{tpu_custom_call.1} parent=19 // pred_fallthru
          _
      $region20: #{tpu_custom_call.1} parent=5 // pred_fallthru
        _
      %p140 = scmp.le.s32.totalorder 1, %s15
      %p141 = scmp.lt.s32.totalorder %s15, 3
      %p142 = pnand %p140, %p141
      %p143 = pneg %p142
      // Predicated region
      $region25: #{tpu_custom_call.1} parent=5 // pred_check
        _
      $region26: #{tpu_custom_call.1} parent=5 // pred_check_branch
        %145 = sbr.rel (%p142) target = $region28
      $region27: #{tpu_custom_call.1} parent=5 // pred_region
        %s146 = ssub.s32 %s15, 1
        %s147 = sand.u32 %s28, 1
        %s148 = scalar_lea.sflag [#allocation3], %s147
        %s149 = sand.u32 %s28, 1
        %s150 = smul.addr %s149, 8
        %s151 = scalar_lea.vmem [#allocation2], %s150
        // Predicated region
        $region29: #{tpu_custom_call.1} parent=27 // pred_check
          %p152 = pneg %p41
        $region30: #{tpu_custom_call.1} parent=27 // pred_check_branch
          %154 = sbr.rel (%p152) target = $region32
        $region31: #{tpu_custom_call.1} parent=27 // pred_region
          %156 = dma.done %s148, 128
        $region32: #{tpu_custom_call.1} parent=27 // pred_fallthru
          _
        // Predicated region
        $region33: #{tpu_custom_call.1} parent=27 // pred_check
          %p157 = pneg %p62
        $region34: #{tpu_custom_call.1} parent=27 // pred_check_branch
          %159 = sbr.rel (%p157) target = $region36
        $region35: #{tpu_custom_call.1} parent=27 // pred_region
          %161 = dma.done [#allocation6], 256
        $region36: #{tpu_custom_call.1} parent=27 // pred_fallthru
          _
        %s162 = sand.u32 %s28, 1
        %s163 = scalar_lea.sflag [#allocation3], %s162
        %s164 = sand.u32 %s28, 1
        %s165 = smul.addr %s164, 8
        %s166 = scalar_lea.vmem [#allocation2], %s165
        %p167 = pneg %p41
        %p168 = pneg %p38
        %p169 = pneg %p62
        %p170 = pneg %p59
        %p171 = pneg %p88
        %p172 = pneg %p85
        %s173 = sand.u32 %s75, 1
        %s174 = scalar_lea.sflag [#allocation4], %s173
        %s175 = sand.u32 %s75, 1
        %s176 = smul.addr %s175, 8
        %s177 = scalar_lea.vmem [#allocation7], %s176
        %v178 = vld [vmem:[%s151] sm:$0xff]
        %vm179 = vcmask 130048
        %v180 = vsel %vm179, %v178, -inf
        %181 = vmax.xlane.f32.xlu0 %v180
        %v182 = vpop.xlane.xlu0 %181
        %v183 = vlaneseq
        %v184 = vand.u32 %v183, 127
        %vm185 = vcmp.eq.f32.partialorder %v178, %v182
        %v186 = vsel %vm185, %v184, 2147483647
        %v187 = vsel %vm179, %v186, 2147483647
        %v188 = vand.u32 %v187, 65535
        %v189 = vshra.s32 %v187, 16
        %v190 = vcvt.s32.f32 %v188
        %v191 = vcvt.s32.f32 %v189
        %192 = vmin.xlane.f32.xlu0 %v191
        %v193 = vpop.xlane.xlu0 %192
        %vm194 = vcmp.eq.f32.partialorder %v191, %v193
        %v195 = vsel %vm194, %v190, inf
        %196 = vmin.xlane.f32.xlu0 %v195
        %v197 = vpop.xlane.xlu0 %196
        %v198 = vcvt.f32.s32 %v197
        %v199 = vcvt.f32.s32 %v193
        %v200 = vshll.u32 %v199, 16
        %v201 = vadd.s32 %v200, %v198
        %vm202 = vcmp.eq.s32.totalorder %v184, %v201
        %v203 = vsel %vm202, 1, 0
        %v204 = vcvt.s32.f32 %v203
        %v205 = vld [vmem:[#allocation5] sm:$0xff]
        %v206 = vld [vmem:[#allocation5 + $0x8] sm:$0xff]
        %v208 = vsel %vm179, %v204, 0
        %210 = vmatpush.msra.mxu0 0.0
        %211 = vmatpush.msra.mxu0 0.0
        %212 = vmatpush.msra.mxu0 0.0
        %213 = vmatpush.msra.mxu0 0.0
        %214 = vmatpush.msra.mxu0 0.0
        %215 = vmatpush.msra.mxu0 0.0
        %216 = vmatpush.msra.mxu0 0.0
        %217 = vmatpush.msra.mxu0 0.0
        %218 = vmatpush.msra.mxu0 0.0
        %219 = vmatpush.msra.mxu0 0.0
        %220 = vmatpush.msra.mxu0 0.0
        %221 = vmatpush.msra.mxu0 0.0
        %222 = vmatpush.msra.mxu0 0.0
        %223 = vmatpush.msra.mxu0 0.0
        %224 = vmatpush.msra.mxu0 %v206
        %225 = vmatpush.msra.mxu0 %v205
        %226 = vmatmul.f32.gmra.mxu0 %v208
        %v227 = vpop.f32.mrf.mxu0
        %v228 = vadd.f32 0.0, %v227
        %229 = vdwg.mxu0
        %230 = vst [vmem:[%s177] sm:$0xff] %v228
        %s231 = sand.u32 %s75, 1
        %s232 = scalar_lea.sflag [#allocation4], %s231
        %s233 = sand.u32 %s75, 1
        %s234 = smul.addr %s233, 8
        %s235 = scalar_lea.vmem [#allocation7], %s234
        // Predicated region
        $region37: #{tpu_custom_call.1} parent=27 // pred_check
          %p236 = pneg %p85
        $region38: #{tpu_custom_call.1} parent=27 // pred_check_branch
          %238 = sbr.rel (%p236) target = $region40
        $region39: #{tpu_custom_call.1} parent=27 // pred_region
          %240 = vsyncadd %s232, 0
          %s241 = smul.addr %s20, 8
          %s242 = scalar_lea.hbm %s2, %s241
          %s244 = sshll.u32 %s235, 4
          %s245 = int_to_ptr.vmem [resolvable:$true] %s244
          %s246 = sshll.u32 %s242, 4
          %s247 = int_to_ptr.hbm [resolvable:$true] %s246
          %249 = dma.vmem_to_hbm [thread:$0]  %s245, 128, %s247, %s232
        $region40: #{tpu_custom_call.1} parent=27 // pred_fallthru
          _
      $region28: #{tpu_custom_call.1} parent=5 // pred_fallthru
        _
      %p250 = scmp.le.s32.totalorder 2, %s15
      // Predicated region
      $region41: #{tpu_custom_call.1} parent=5 // pred_check
        %p251 = pneg %p250
      $region42: #{tpu_custom_call.1} parent=5 // pred_check_branch
        %253 = sbr.rel (%p251) target = $region44
      $region43: #{tpu_custom_call.1} parent=5 // pred_region
        %s254 = ssub.s32 %s15, 2
        // Predicated region
        $region45: #{tpu_custom_call.1} parent=43 // pred_check
          %p255 = pneg %p91
        $region46: #{tpu_custom_call.1} parent=43 // pred_check_branch
          %257 = sbr.rel (%p255) target = $region48
        $region47: #{tpu_custom_call.1} parent=43 // pred_region
          %s258 = sand.u32 %s76, 1
          %s259 = scalar_lea.sflag [#allocation4], %s258
          %s260 = sand.u32 %s76, 1
          %s261 = smul.addr %s260, 8
          %s262 = scalar_lea.vmem [#allocation7], %s261
          %264 = dma.done %s259, 128
        $region48: #{tpu_custom_call.1} parent=43 // pred_fallthru
          _
      $region44: #{tpu_custom_call.1} parent=5 // pred_fallthru
        _
    $region6: #{tpu_custom_call.1} parent=1 // loop_footer
      %s19 = sadd.s32 1, %s15
    $region7: #{tpu_custom_call.1} parent=1 // loop_footer_branch
      %14 = sbr.rel target = $region3
    $region8: #{tpu_custom_call.1} parent=1 // loop_exit
      _
    %265 = vsyncpa [#allocation3], 1
    %s266 = scalar_lea.sflag [#allocation3], 1
    %267 = vsyncpa %s266, 1
    %268 = vsyncpa [#allocation6], 1
    %269 = vsyncpa [#allocation4], 1
    %s270 = scalar_lea.sflag [#allocation4], 1
    %271 = vsyncpa %s270, 1

// kernel: tpu_custom_call.1
$region0: #{tpu_custom_call.1}
  #allocation0 [shape = 'u32[]', space=smem, size = 0x4, offset = 0x4, fixed_abs, tag = 'smem constant byte address 0x4 - core index']
  #allocation1 [shape = 'u32[72,128]{1,0:T(1,128)}', space=vmem, size = 0x9000, scoped, tag = 'internal scratch']
  %s0 = inlined_call_operand.hbm [shape: f32[16,16], index: 0, kind: input, shape index: {}]
  %s1 = inlined_call_operand.hbm [shape: f32[16,128], index: 1, kind: input, shape index: {}]
  %s2 = inlined_call_operand.hbm [shape: f32[16,128], index: 2, kind: output, shape index: {}]
  %s3 = sld [smem:[#allocation0]]
  $region49: #{tpu_custom_call.1} parent=0
    _
  %s5 = ssub.s32 1, %s3
  %s6 = scalar_select 0, %s5, %s3
  $region1: #{tpu_custom_call.1} parent=0
    #allocation2 [shape = 'u8[8192]{0}', space=vmem, size = 0x2000, scoped, tag = 'input window, operand 0']
    #allocation3 [shape = 's32[2]{0}', space=sflag, size = 0x8, scoped, tag = 'scoped memory for tpu_custom_call.1']
    #allocation4 [shape = 's32[2]{0}', space=sflag, size = 0x8, scoped, tag = 'scoped memory for tpu_custom_call.1']
    #allocation5 [shape = 'u8[8192]{0}', space=vmem, size = 0x2000, scoped, tag = 'input window, operand 1, single buffered']
    #allocation6 [shape = 's32[1]{0}', space=sflag, size = 0x4, scoped, tag = 'scoped memory for tpu_custom_call.1']
    #allocation7 [shape = 'u8[8192]{0}', space=vmem, size = 0x2000, scoped, tag = 'output window, operand 0']
    %7 = vsyncpa [#allocation3], 0
    %s8 = scalar_lea.sflag [#allocation3], 1
    %9 = vsyncpa %s8, 0
    %10 = vsyncpa [#allocation6], 0
    %11 = vsyncpa [#allocation4], 0
    %s12 = scalar_lea.sflag [#allocation4], 1
    %13 = vsyncpa %s12, 0
    loop: start=0, step=1, limit=4
    $region2: #{tpu_custom_call.1} parent=1 // loop_pre_header
      _
    $region3: #{tpu_custom_call.1} parent=1 // loop_header
      %s15 = sphi 0, %s19
      %p16 = scmp.ge.s32.totalorder %s15, 4
      %s25 = sphi 0, %s27
      %s28 = sphi 0, %s25
      %s29 = sphi 0, %s28
      %s45 = sphi 0, %s29
      %s49 = sphi 0, %s49
      %s51 = sphi 0, %s49
      %s52 = sphi 0, %s51
      %s66 = sphi 0, %s52
      %s72 = sphi 0, %s74
      %s75 = sphi 0, %s72
      %s76 = sphi 0, %s75
      %s92 = sphi 0, %s76
    $region4: #{tpu_custom_call.1} parent=1 // loop_header_branch
      %18 = sbr.rel (%p16) target = $region8
    $region5: #{tpu_custom_call.1} parent=1 // loop_body
      %s20 = ssub.s32 %s15, 1
      %s21 = ssub.s32 %s15, 2
      %s22 = sadd.s32 %s15, 1
      %s23 = ssub.s32 %s15, %s22
      %p24 = scmp.eq.s32.totalorder %s23, 0
      %s26 = sadd.s32 %s25, 1
      %s27 = scalar_select %p24, %s25, %s26
      %p30 = pneg %p24
      %p31 = scmp.eq.s32.totalorder %s15, 1
      %p32 = por %p30, %p31
      %p33 = scmp.ne.s32.totalorder %s25, %s28
      %p34 = scmp.eq.s32.totalorder %s15, 0
      %p35 = por %p33, %p34
      %p36 = scmp.ne.s32.totalorder %s25, %s28
      %p37 = scmp.eq.s32.totalorder %s20, 1
      %p38 = por %p36, %p37
      %p39 = scmp.ne.s32.totalorder %s28, %s29
      %p40 = scmp.eq.s32.totalorder %s20, 0
      %p41 = por %p39, %p40
      %p42 = scmp.ne.s32.totalorder %s28, %s29
      %p43 = scmp.eq.s32.totalorder %s21, 1
      %p44 = por %p42, %p43
      %p46 = scmp.ne.s32.totalorder %s29, %s45
      %p47 = scmp.eq.s32.totalorder %s21, 0
      %p48 = por %p46, %p47
      %s50 = sadd.s32 %s49, 1
      %p53 = scmp.eq.s32.totalorder %s15, 1
      %p54 = scmp.ne.s32.totalorder %s49, %s51
      %p55 = scmp.eq.s32.totalorder %s15, 0
      %p56 = por %p54, %p55
      %p57 = scmp.ne.s32.totalorder %s49, %s51
      %p58 = scmp.eq.s32.totalorder %s20, 1
      %p59 = por %p57, %p58
      %p60 = scmp.ne.s32.totalorder %s51, %s52
      %p61 = scmp.eq.s32.totalorder %s20, 0
      %p62 = por %p60, %p61
      %p63 = scmp.ne.s32.totalorder %s51, %s52
      %p64 = scmp.eq.s32.totalorder %s21, 1
      %p65 = por %p63, %p64
      %p67 = scmp.ne.s32.totalorder %s52, %s66
      %p68 = scmp.eq.s32.totalorder %s21, 0
      %p69 = por %p67, %p68
      %s70 = ssub.s32 %s15, %s22
      %p71 = scmp.eq.s32.totalorder %s70, 0
      %s73 = sadd.s32 %s72, 1
      %s74 = scalar_select %p71, %s72, %s73
      %p77 = pneg %p71
      %p78 = scmp.eq.s32.totalorder %s15, 1
      %p79 = por %p77, %p78
      %p80 = scmp.ne.s32.totalorder %s72, %s75
      %p81 = scmp.eq.s32.totalorder %s15, 0
      %p82 = por %p80, %p81
      %p83 = scmp.ne.s32.totalorder %s72, %s75
      %p84 = scmp.eq.s32.totalorder %s20, 1
      %p85 = por %p83, %p84
      %p86 = scmp.ne.s32.totalorder %s75, %s76
      %p87 = scmp.eq.s32.totalorder %s20, 0
      %p88 = por %p86, %p87
      %p89 = scmp.ne.s32.totalorder %s75, %s76
      %p90 = scmp.eq.s32.totalorder %s21, 1
      %p91 = por %p89, %p90
      %p93 = scmp.ne.s32.totalorder %s76, %s92
      %p94 = scmp.eq.s32.totalorder %s21, 0
      %p95 = por %p93, %p94
      %p96 = scmp.le.s32.totalorder 1, %s15
      %p97 = scmp.lt.s32.totalorder %s15, 3
      %p98 = pnand %p96, %p97
      %p99 = pneg %p98
      // Predicated region
      $region9: #{tpu_custom_call.1} parent=5 // pred_check
        _
      $region10: #{tpu_custom_call.1} parent=5 // pred_check_branch
        %101 = sbr.rel (%p98) target = $region12
      $region11: #{tpu_custom_call.1} parent=5 // pred_region
        %s102 = ssub.s32 %s15, 1
        // Predicated region
        $region13: #{tpu_custom_call.1} parent=11 // pred_check
          %p103 = pneg %p62
        $region14: #{tpu_custom_call.1} parent=11 // pred_check_branch
          %105 = sbr.rel (%p103) target = $region16
        $region15: #{tpu_custom_call.1} parent=11 // pred_region
          %107 = vsyncadd [#allocation6], 0
          %s108 = sshll.u32 %s1, 4
          %s109 = int_to_ptr.hbm [resolvable:$true] %s108
          %s110 = sshll.u32 [#allocation5], 4
          %s111 = int_to_ptr.vmem [resolvable:$true] %s110
          %116 = dma.hbm_to_vmem [thread:$0]  %s109, 256, %s111, [#allocation6], 128, 128, 8
        $region16: #{tpu_custom_call.1} parent=11 // pred_fallthru
          _
      $region12: #{tpu_custom_call.1} parent=5 // pred_fallthru
        _
      %p117 = scmp.lt.s32.totalorder %s15, 2
      // Predicated region
      $region17: #{tpu_custom_call.1} parent=5 // pred_check
        %p118 = pneg %p117
      $region18: #{tpu_custom_call.1} parent=5 // pred_check_branch
        %120 = sbr.rel (%p118) target = $region20
      $region19: #{tpu_custom_call.1} parent=5 // pred_region
        // Predicated region
        $region21: #{tpu_custom_call.1} parent=19 // pred_check
          %p121 = pneg %p35
        $region22: #{tpu_custom_call.1} parent=19 // pred_check_branch
          %123 = sbr.rel (%p121) target = $region24
        $region23: #{tpu_custom_call.1} parent=19 // pred_region
          %s124 = sand.u32 %s25, 1
          %s125 = scalar_lea.sflag [#allocation3], %s124
          %s126 = sand.u32 %s25, 1
          %s127 = smul.addr %s126, 8
          %s128 = scalar_lea.vmem [#allocation2], %s127
          %130 = vsyncadd %s125, 0
          %s131 = smul.addr %s15, 8
          %s132 = scalar_lea.hbm %s0, %s131
          %s134 = sshll.u32 %s132, 4
          %s135 = int_to_ptr.hbm [resolvable:$true] %s134
          %s136 = sshll.u32 %s128, 4
          %s137 = int_to_ptr.vmem [resolvable:$true] %s136
          %139 = dma.hbm_to_vmem [thread:$0]  %s135, 128, %s137, %s125
        $region24: #{tpu_custom_call.1} parent=19 // pred_fallthru
          _
      $region20: #{tpu_custom_call.1} parent=5 // pred_fallthru
        _
      %p140 = scmp.le.s32.totalorder 1, %s15
      %p141 = scmp.lt.s32.totalorder %s15, 3
      %p142 = pnand %p140, %p141
      %p143 = pneg %p142
      // Predicated region
      $region25: #{tpu_custom_call.1} parent=5 // pred_check
        _
      $region26: #{tpu_custom_call.1} parent=5 // pred_check_branch
        %145 = sbr.rel (%p142) target = $region28
      $region27: #{tpu_custom_call.1} parent=5 // pred_region
        %s146 = ssub.s32 %s15, 1
        %s147 = sand.u32 %s28, 1
        %s148 = scalar_lea.sflag [#allocation3], %s147
        %s149 = sand.u32 %s28, 1
        %s150 = smul.addr %s149, 8
        %s151 = scalar_lea.vmem [#allocation2], %s150
        // Predicated region
        $region29: #{tpu_custom_call.1} parent=27 // pred_check
          %p152 = pneg %p41
        $region30: #{tpu_custom_call.1} parent=27 // pred_check_branch
          %154 = sbr.rel (%p152) target = $region32
        $region31: #{tpu_custom_call.1} parent=27 // pred_region
          %156 = dma.done %s148, 128
        $region32: #{tpu_custom_call.1} parent=27 // pred_fallthru
          _
        // Predicated region
        $region33: #{tpu_custom_call.1} parent=27 // pred_check
          %p157 = pneg %p62
        $region34: #{tpu_custom_call.1} parent=27 // pred_check_branch
          %159 = sbr.rel (%p157) target = $region36
        $region35: #{tpu_custom_call.1} parent=27 // pred_region
          %161 = dma.done [#allocation6], 256
        $region36: #{tpu_custom_call.1} parent=27 // pred_fallthru
          _
        %s162 = sand.u32 %s28, 1
        %s163 = scalar_lea.sflag [#allocation3], %s162
        %s164 = sand.u32 %s28, 1
        %s165 = smul.addr %s164, 8
        %s166 = scalar_lea.vmem [#allocation2], %s165
        %p167 = pneg %p41
        %p168 = pneg %p38
        %p169 = pneg %p62
        %p170 = pneg %p59
        %p171 = pneg %p88
        %p172 = pneg %p85
        %s173 = sand.u32 %s75, 1
        %s174 = scalar_lea.sflag [#allocation4], %s173
        %s175 = sand.u32 %s75, 1
        %s176 = smul.addr %s175, 8
        %s177 = scalar_lea.vmem [#allocation7], %s176
        %v178 = vld [vmem:[%s151] sm:$0xff]
        %vm179 = vcmask 130048
        %v180 = vsel %vm179, %v178, -inf
        %181 = vmax.xlane.f32.xlu0 %v180
        %v182 = vpop.xlane.xlu0 %181
        %v183 = vlaneseq
        %v184 = vand.u32 %v183, 127
        %vm185 = vcmp.eq.f32.partialorder %v178, %v182
        %v186 = vsel %vm185, %v184, 2147483647
        %v187 = vsel %vm179, %v186, 2147483647
        %v188 = vand.u32 %v187, 65535
        %v189 = vshra.s32 %v187, 16
        %v190 = vcvt.s32.f32 %v188
        %v191 = vcvt.s32.f32 %v189
        %192 = vmin.xlane.f32.xlu0 %v191
        %v193 = vpop.xlane.xlu0 %192
        %vm194 = vcmp.eq.f32.partialorder %v191, %v193
        %v195 = vsel %vm194, %v190, inf
        %196 = vmin.xlane.f32.xlu0 %v195
        %v197 = vpop.xlane.xlu0 %196
        %v198 = vcvt.f32.s32 %v197
        %v199 = vcvt.f32.s32 %v193
        %v200 = vshll.u32 %v199, 16
        %v201 = vadd.s32 %v200, %v198
        %vm202 = vcmp.eq.s32.totalorder %v184, %v201
        %v203 = vsel %vm202, 1, 0
        %v204 = vcvt.s32.f32 %v203
        %v205 = vld [vmem:[#allocation5] sm:$0xff]
        %v206 = vld [vmem:[#allocation5 + $0x8] sm:$0xff]
        %v208 = vsel %vm179, %v204, 0
        %210 = vmatpush.msra.mxu0 0.0
        %211 = vmatpush.msra.mxu0 0.0
        %212 = vmatpush.msra.mxu0 0.0
        %213 = vmatpush.msra.mxu0 0.0
        %214 = vmatpush.msra.mxu0 0.0
        %215 = vmatpush.msra.mxu0 0.0
        %216 = vmatpush.msra.mxu0 0.0
        %217 = vmatpush.msra.mxu0 0.0
        %218 = vmatpush.msra.mxu0 0.0
        %219 = vmatpush.msra.mxu0 0.0
        %220 = vmatpush.msra.mxu0 0.0
        %221 = vmatpush.msra.mxu0 0.0
        %222 = vmatpush.msra.mxu0 0.0
        %223 = vmatpush.msra.mxu0 0.0
        %224 = vmatpush.msra.mxu0 %v206
        %225 = vmatpush.msra.mxu0 %v205
        %226 = vmatmul.f32.gmra.mxu0 %v208
        %v227 = vpop.f32.mrf.mxu0
        %v228 = vadd.f32 0.0, %v227
        %229 = vdwg.mxu0
        %230 = vst [vmem:[%s177] sm:$0xff] %v228
        %s231 = sand.u32 %s75, 1
        %s232 = scalar_lea.sflag [#allocation4], %s231
        %s233 = sand.u32 %s75, 1
        %s234 = smul.addr %s233, 8
        %s235 = scalar_lea.vmem [#allocation7], %s234
        // Predicated region
        $region37: #{tpu_custom_call.1} parent=27 // pred_check
          %p236 = pneg %p85
        $region38: #{tpu_custom_call.1} parent=27 // pred_check_branch
          %238 = sbr.rel (%p236) target = $region40
        $region39: #{tpu_custom_call.1} parent=27 // pred_region
          %240 = vsyncadd %s232, 0
          %s241 = smul.addr %s20, 8
          %s242 = scalar_lea.hbm %s2, %s241
          %s244 = sshll.u32 %s235, 4
          %s245 = int_to_ptr.vmem [resolvable:$true] %s244
          %s246 = sshll.u32 %s242, 4
          %s247 = int_to_ptr.hbm [resolvable:$true] %s246
          %249 = dma.vmem_to_hbm [thread:$0]  %s245, 128, %s247, %s232
        $region40: #{tpu_custom_call.1} parent=27 // pred_fallthru
          _
      $region28: #{tpu_custom_call.1} parent=5 // pred_fallthru
        _
      %p250 = scmp.le.s32.totalorder 2, %s15
      // Predicated region
      $region41: #{tpu_custom_call.1} parent=5 // pred_check
        %p251 = pneg %p250
      $region42: #{tpu_custom_call.1} parent=5 // pred_check_branch
        %253 = sbr.rel (%p251) target = $region44
      $region43: #{tpu_custom_call.1} parent=5 // pred_region
        %s254 = ssub.s32 %s15, 2
        // Predicated region
        $region45: #{tpu_custom_call.1} parent=43 // pred_check
          %p255 = pneg %p91
        $region46: #{tpu_custom_call.1} parent=43 // pred_check_branch
          %257 = sbr.rel (%p255) target = $region48
        $region47: #{tpu_custom_call.1} parent=43 // pred_region
          %s258 = sand.u32 %s76, 1
          %s259 = scalar_lea.sflag [#allocation4], %s258
          %s260 = sand.u32 %s76, 1
          %s261 = smul.addr %s260, 8
          %s262 = scalar_lea.vmem [#allocation7], %s261
          %264 = dma.done %s259, 128
        $region48: #{tpu_custom_call.1} parent=43 // pred_fallthru
          _
      $region44: #{tpu_custom_call.1} parent=5 // pred_fallthru
        _
    $region6: #{tpu_custom_call.1} parent=1 // loop_footer
      %s19 = sadd.s32 1, %s15
    $region7: #{tpu_custom_call.1} parent=1 // loop_footer_branch
      %14 = sbr.rel target = $region3
    $region8: #{tpu_custom_call.1} parent=1 // loop_exit
      _
    %265 = vsyncpa [#allocation3], 1
    %s266 = scalar_lea.sflag [#allocation3], 1
    %267 = vsyncpa %s266, 1
    %268 = vsyncpa [#allocation6], 1
    %269 = vsyncpa [#allocation4], 1
    %s270 = scalar_lea.sflag [#allocation4], 1
    %271 = vsyncpa %s270, 1

</llo_original>
